<compile_context>
chip_gen: v5e
topology: v5e:2x2
jax: 0.10.0
libtpu: 0.0.40
codegen_flags: <defaults>
</compile_context>

<pallas_src>
import jax
import jax.numpy as jnp
from jax.experimental import pallas as pl
from jax.experimental.pallas import tpu as pltpu


def _choose_chunks(rows: int) -> int:
    """Small number of equal row-chunks for DMA-issue overlap."""
    for n in (4, 2):
        if rows % n == 0:
            return n
    return 1


def _make_dma_copy_kernel(n_chunks: int, chunk_rows: int):
    """HBM->HBM identity copy as n_chunks async DMAs (start all, wait all)."""

    def kernel(x_hbm, o_hbm, sem):
        # Issue every chunk first so the DMA engine streams them back-to-back.
        for i in range(n_chunks):
            pltpu.make_async_copy(
                x_hbm.at[pl.ds(i * chunk_rows, chunk_rows)],
                o_hbm.at[pl.ds(i * chunk_rows, chunk_rows)],
                sem.at[i],
            ).start()
        for i in range(n_chunks):
            pltpu.make_async_copy(
                x_hbm.at[pl.ds(i * chunk_rows, chunk_rows)],
                o_hbm.at[pl.ds(i * chunk_rows, chunk_rows)],
                sem.at[i],
            ).wait()

    return kernel


def view(x: jax.Array, o: int) -> jax.Array:
    """Equivalent of torch.Tensor.view(-1, o) for a contiguous tensor."""
    total = x.size
    if total % o != 0:
        raise ValueError(f"cannot view array of {total} elements as (-1, {o})")
    rows_out = total // o

    # Metadata-only reshape of the contiguous element stream to the final
    # (rows_out, o) layout (same precondition torch .view imposes).  The DMA
    # below then copies bytes HBM->HBM with matching src/dst shapes.
    x2d = jnp.reshape(x, (rows_out, o))

    n_chunks = _choose_chunks(rows_out)
    chunk_rows = rows_out // n_chunks

    out = pl.pallas_call(
        _make_dma_copy_kernel(n_chunks, chunk_rows),
        out_shape=jax.ShapeDtypeStruct((rows_out, o), x.dtype),
        in_specs=[pl.BlockSpec(memory_space=pl.ANY)],
        out_specs=pl.BlockSpec(memory_space=pl.ANY),
        scratch_shapes=[pltpu.SemaphoreType.DMA((n_chunks,))],
        cost_estimate=pl.CostEstimate(
            flops=0,
            transcendentals=0,
            bytes_accessed=2 * total * x.dtype.itemsize,
        ),
    )(x2d)

    return out


if __name__ == "__main__":
    key = jax.random.PRNGKey(0)
    # Small NCHW-style input consistent with the module's forward.
    x = jax.random.normal(key, (2, 4, 16, 16), dtype=jnp.float32)
    o = 32  # View(o=32): 2*4*16*16 = 2048 -> (64, 32)

    out = view(x, o)
    out = jax.block_until_ready(out)

    # Correctness check vs. plain reshape (torch .view semantics).
    expected = jnp.reshape(x, (-1, o))
    assert out.shape == (64, 32), out.shape
    assert out.dtype == x.dtype, out.dtype
    assert bool(jnp.array_equal(out, expected))

    print("KERNEL_OK")
</pallas_src>

<mosaic_0001>
module attributes {stable_mosaic.version = 11 : i64} {
  func.func @kernel(%arg0: memref<64x32xf32, #tpu.memory_space<any>>, %arg1: memref<64x32xf32, #tpu.memory_space<any>>, %arg2: memref<4x!tpu.dma_semaphore, #tpu.memory_space<semaphore_mem>>) attributes {dimension_semantics = [], scalar_prefetch = 0 : i64, scratch_operands = 1 : i64, tpu.core_type = #tpu.core_type<tc>} {
    %c0_i32 = arith.constant 0 : i32
    %c0_i32_0 = arith.constant 0 : i32
    %c0_i32_1 = arith.constant 0 : i32
    %0 = tpu.memref_slice %arg0[%c0_i32_0, %c0_i32_1] : memref<64x32xf32, #tpu.memory_space<any>> -> memref<16x32xf32, #tpu.memory_space<any>>
    %c0_i32_2 = arith.constant 0 : i32
    %c0_i32_3 = arith.constant 0 : i32
    %1 = tpu.memref_slice %arg1[%c0_i32_2, %c0_i32_3] : memref<64x32xf32, #tpu.memory_space<any>> -> memref<16x32xf32, #tpu.memory_space<any>>
    %2 = tpu.memref_slice %arg2[%c0_i32] : memref<4x!tpu.dma_semaphore, #tpu.memory_space<semaphore_mem>> -> memref<1x!tpu.dma_semaphore, #tpu.memory_space<semaphore_mem>>
    %3 = tpu.memref_squeeze %2 : memref<1x!tpu.dma_semaphore, #tpu.memory_space<semaphore_mem>> -> memref<!tpu.dma_semaphore, #tpu.memory_space<semaphore_mem>>
    tpu.enqueue_dma source(%0 : memref<16x32xf32, #tpu.memory_space<any>>) target(%1 : memref<16x32xf32, #tpu.memory_space<any>>) target_semaphore(%3 : memref<!tpu.dma_semaphore, #tpu.memory_space<semaphore_mem>>)
    %c1_i32 = arith.constant 1 : i32
    %c16_i32 = arith.constant 16 : i32
    %c0_i32_4 = arith.constant 0 : i32
    %4 = tpu.memref_slice %arg0[%c16_i32, %c0_i32_4] : memref<64x32xf32, #tpu.memory_space<any>> -> memref<16x32xf32, #tpu.memory_space<any>>
    %c16_i32_5 = arith.constant 16 : i32
    %c0_i32_6 = arith.constant 0 : i32
    %5 = tpu.memref_slice %arg1[%c16_i32_5, %c0_i32_6] : memref<64x32xf32, #tpu.memory_space<any>> -> memref<16x32xf32, #tpu.memory_space<any>>
    %6 = tpu.memref_slice %arg2[%c1_i32] : memref<4x!tpu.dma_semaphore, #tpu.memory_space<semaphore_mem>> -> memref<1x!tpu.dma_semaphore, #tpu.memory_space<semaphore_mem>>
    %7 = tpu.memref_squeeze %6 : memref<1x!tpu.dma_semaphore, #tpu.memory_space<semaphore_mem>> -> memref<!tpu.dma_semaphore, #tpu.memory_space<semaphore_mem>>
    tpu.enqueue_dma source(%4 : memref<16x32xf32, #tpu.memory_space<any>>) target(%5 : memref<16x32xf32, #tpu.memory_space<any>>) target_semaphore(%7 : memref<!tpu.dma_semaphore, #tpu.memory_space<semaphore_mem>>)
    %c2_i32 = arith.constant 2 : i32
    %c32_i32 = arith.constant 32 : i32
    %c0_i32_7 = arith.constant 0 : i32
    %8 = tpu.memref_slice %arg0[%c32_i32, %c0_i32_7] : memref<64x32xf32, #tpu.memory_space<any>> -> memref<16x32xf32, #tpu.memory_space<any>>
    %c32_i32_8 = arith.constant 32 : i32
    %c0_i32_9 = arith.constant 0 : i32
    %9 = tpu.memref_slice %arg1[%c32_i32_8, %c0_i32_9] : memref<64x32xf32, #tpu.memory_space<any>> -> memref<16x32xf32, #tpu.memory_space<any>>
    %10 = tpu.memref_slice %arg2[%c2_i32] : memref<4x!tpu.dma_semaphore, #tpu.memory_space<semaphore_mem>> -> memref<1x!tpu.dma_semaphore, #tpu.memory_space<semaphore_mem>>
    %11 = tpu.memref_squeeze %10 : memref<1x!tpu.dma_semaphore, #tpu.memory_space<semaphore_mem>> -> memref<!tpu.dma_semaphore, #tpu.memory_space<semaphore_mem>>
    tpu.enqueue_dma source(%8 : memref<16x32xf32, #tpu.memory_space<any>>) target(%9 : memref<16x32xf32, #tpu.memory_space<any>>) target_semaphore(%11 : memref<!tpu.dma_semaphore, #tpu.memory_space<semaphore_mem>>)
    %c3_i32 = arith.constant 3 : i32
    %c48_i32 = arith.constant 48 : i32
    %c0_i32_10 = arith.constant 0 : i32
    %12 = tpu.memref_slice %arg0[%c48_i32, %c0_i32_10] : memref<64x32xf32, #tpu.memory_space<any>> -> memref<16x32xf32, #tpu.memory_space<any>>
    %c48_i32_11 = arith.constant 48 : i32
    %c0_i32_12 = arith.constant 0 : i32
    %13 = tpu.memref_slice %arg1[%c48_i32_11, %c0_i32_12] : memref<64x32xf32, #tpu.memory_space<any>> -> memref<16x32xf32, #tpu.memory_space<any>>
    %14 = tpu.memref_slice %arg2[%c3_i32] : memref<4x!tpu.dma_semaphore, #tpu.memory_space<semaphore_mem>> -> memref<1x!tpu.dma_semaphore, #tpu.memory_space<semaphore_mem>>
    %15 = tpu.memref_squeeze %14 : memref<1x!tpu.dma_semaphore, #tpu.memory_space<semaphore_mem>> -> memref<!tpu.dma_semaphore, #tpu.memory_space<semaphore_mem>>
    tpu.enqueue_dma source(%12 : memref<16x32xf32, #tpu.memory_space<any>>) target(%13 : memref<16x32xf32, #tpu.memory_space<any>>) target_semaphore(%15 : memref<!tpu.dma_semaphore, #tpu.memory_space<semaphore_mem>>)
    %c0_i32_13 = arith.constant 0 : i32
    %c0_i32_14 = arith.constant 0 : i32
    %c0_i32_15 = arith.constant 0 : i32
    %16 = tpu.memref_slice %arg0[%c0_i32_14, %c0_i32_15] : memref<64x32xf32, #tpu.memory_space<any>> -> memref<16x32xf32, #tpu.memory_space<any>>
    %c0_i32_16 = arith.constant 0 : i32
    %c0_i32_17 = arith.constant 0 : i32
    %17 = tpu.memref_slice %arg1[%c0_i32_16, %c0_i32_17] : memref<64x32xf32, #tpu.memory_space<any>> -> memref<16x32xf32, #tpu.memory_space<any>>
    %18 = tpu.memref_slice %arg2[%c0_i32_13] : memref<4x!tpu.dma_semaphore, #tpu.memory_space<semaphore_mem>> -> memref<1x!tpu.dma_semaphore, #tpu.memory_space<semaphore_mem>>
    %19 = tpu.memref_squeeze %18 : memref<1x!tpu.dma_semaphore, #tpu.memory_space<semaphore_mem>> -> memref<!tpu.dma_semaphore, #tpu.memory_space<semaphore_mem>>
    tpu.wait_dma2 semaphore(%19 : memref<!tpu.dma_semaphore, #tpu.memory_space<semaphore_mem>>) src(%16 : memref<16x32xf32, #tpu.memory_space<any>>) dst(%17 : memref<16x32xf32, #tpu.memory_space<any>>)
    %c1_i32_18 = arith.constant 1 : i32
    %c16_i32_19 = arith.constant 16 : i32
    %c0_i32_20 = arith.constant 0 : i32
    %20 = tpu.memref_slice %arg0[%c16_i32_19, %c0_i32_20] : memref<64x32xf32, #tpu.memory_space<any>> -> memref<16x32xf32, #tpu.memory_space<any>>
    %c16_i32_21 = arith.constant 16 : i32
    %c0_i32_22 = arith.constant 0 : i32
    %21 = tpu.memref_slice %arg1[%c16_i32_21, %c0_i32_22] : memref<64x32xf32, #tpu.memory_space<any>> -> memref<16x32xf32, #tpu.memory_space<any>>
    %22 = tpu.memref_slice %arg2[%c1_i32_18] : memref<4x!tpu.dma_semaphore, #tpu.memory_space<semaphore_mem>> -> memref<1x!tpu.dma_semaphore, #tpu.memory_space<semaphore_mem>>
    %23 = tpu.memref_squeeze %22 : memref<1x!tpu.dma_semaphore, #tpu.memory_space<semaphore_mem>> -> memref<!tpu.dma_semaphore, #tpu.memory_space<semaphore_mem>>
    tpu.wait_dma2 semaphore(%23 : memref<!tpu.dma_semaphore, #tpu.memory_space<semaphore_mem>>) src(%20 : memref<16x32xf32, #tpu.memory_space<any>>) dst(%21 : memref<16x32xf32, #tpu.memory_space<any>>)
    %c2_i32_23 = arith.constant 2 : i32
    %c32_i32_24 = arith.constant 32 : i32
    %c0_i32_25 = arith.constant 0 : i32
    %24 = tpu.memref_slice %arg0[%c32_i32_24, %c0_i32_25] : memref<64x32xf32, #tpu.memory_space<any>> -> memref<16x32xf32, #tpu.memory_space<any>>
    %c32_i32_26 = arith.constant 32 : i32
    %c0_i32_27 = arith.constant 0 : i32
    %25 = tpu.memref_slice %arg1[%c32_i32_26, %c0_i32_27] : memref<64x32xf32, #tpu.memory_space<any>> -> memref<16x32xf32, #tpu.memory_space<any>>
    %26 = tpu.memref_slice %arg2[%c2_i32_23] : memref<4x!tpu.dma_semaphore, #tpu.memory_space<semaphore_mem>> -> memref<1x!tpu.dma_semaphore, #tpu.memory_space<semaphore_mem>>
    %27 = tpu.memref_squeeze %26 : memref<1x!tpu.dma_semaphore, #tpu.memory_space<semaphore_mem>> -> memref<!tpu.dma_semaphore, #tpu.memory_space<semaphore_mem>>
    tpu.wait_dma2 semaphore(%27 : memref<!tpu.dma_semaphore, #tpu.memory_space<semaphore_mem>>) src(%24 : memref<16x32xf32, #tpu.memory_space<any>>) dst(%25 : memref<16x32xf32, #tpu.memory_space<any>>)
    %c3_i32_28 = arith.constant 3 : i32
    %c48_i32_29 = arith.constant 48 : i32
    %c0_i32_30 = arith.constant 0 : i32
    %28 = tpu.memref_slice %arg0[%c48_i32_29, %c0_i32_30] : memref<64x32xf32, #tpu.memory_space<any>> -> memref<16x32xf32, #tpu.memory_space<any>>
    %c48_i32_31 = arith.constant 48 : i32
    %c0_i32_32 = arith.constant 0 : i32
    %29 = tpu.memref_slice %arg1[%c48_i32_31, %c0_i32_32] : memref<64x32xf32, #tpu.memory_space<any>> -> memref<16x32xf32, #tpu.memory_space<any>>
    %30 = tpu.memref_slice %arg2[%c3_i32_28] : memref<4x!tpu.dma_semaphore, #tpu.memory_space<semaphore_mem>> -> memref<1x!tpu.dma_semaphore, #tpu.memory_space<semaphore_mem>>
    %31 = tpu.memref_squeeze %30 : memref<1x!tpu.dma_semaphore, #tpu.memory_space<semaphore_mem>> -> memref<!tpu.dma_semaphore, #tpu.memory_space<semaphore_mem>>
    tpu.wait_dma2 semaphore(%31 : memref<!tpu.dma_semaphore, #tpu.memory_space<semaphore_mem>>) src(%28 : memref<16x32xf32, #tpu.memory_space<any>>) dst(%29 : memref<16x32xf32, #tpu.memory_space<any>>)
    return
  }
}

</mosaic_0001>

<llo_original>
// kernel: tpu_custom_call.1
$region0: #{tpu_custom_call.1}
  #allocation0 [shape = 'u32[]', space=smem, size = 0x4, offset = 0x4, fixed_abs, tag = 'smem constant byte address 0x4 - core index']
  #allocation1 [shape = 'u32[72,128]{1,0:T(1,128)}', space=vmem, size = 0x9000, scoped, tag = 'internal scratch']
  #allocation2 [shape = 's32[4]{0}', space=sflag, size = 0x10, scoped, tag = 'scratch operand']
  #allocation3 [shape = 's32[]', space=sflag, size = 0x4, offset = 0, fixed_abs, tag = 'sflag constant byte address 0x0 - dummy sync flag']
  #allocation4 [shape = 's32[]', space=sflag, size = 0x4, offset = 0, fixed_abs, tag = 'sflag constant byte address 0x0 - dummy sync flag']
  #allocation5 [shape = 's32[]', space=sflag, size = 0x4, offset = 0, fixed_abs, tag = 'sflag constant byte address 0x0 - dummy sync flag']
  #allocation6 [shape = 's32[]', space=sflag, size = 0x4, offset = 0, fixed_abs, tag = 'sflag constant byte address 0x0 - dummy sync flag']
  %s0 = inlined_call_operand.vmem [shape: f32[64,32], index: 0, kind: input, shape index: {}]
  %s1 = inlined_call_operand.vmem [shape: f32[64,32], index: 1, kind: output, shape index: {}]
  %s2 = sld [smem:[#allocation0]]
  $region78: #{tpu_custom_call.1} parent=0
    _
  %s4 = ssub.s32 1, %s2
  %s5 = scalar_select 0, %s4, %s2
  // Predicated region
  $region2: #{tpu_custom_call.1} parent=0 // pred_check
    _
  $region3: #{tpu_custom_call.1} parent=0 // pred_check_branch
    %7 = sbr.rel (0) target = $region5
  $region4: #{tpu_custom_call.1} parent=0 // pred_region
    loop: start=0, step=1, limit=1
    $region6: #{tpu_custom_call.1} parent=4 // loop_pre_header
      _
    $region7: #{tpu_custom_call.1} parent=4 // loop_header
      %s9 = sphi 0, %s13
      %p10 = scmp.ge.s32.totalorder %s9, 1
      %s14 = sphi %s0, %s0
      %s15 = sphi %s1, %s1
    $region8: #{tpu_custom_call.1} parent=4 // loop_header_branch
      %12 = sbr.rel (%p10) target = $region12
    $region9: #{tpu_custom_call.1} parent=4 // loop_body
      %v16 = vld [vmem:[%s14] sm:$0xff]
      %17 = vst [vmem:[%s15] sm:$0xff] %v16
      %v18 = vld [vmem:[%s14 + $0x8] sm:$0xff]
      %19 = vst [vmem:[%s15 + $0x8] sm:$0xff] %v18
    $region10: #{tpu_custom_call.1} parent=4 // loop_footer
      %s13 = sadd.s32 1, %s9
    $region11: #{tpu_custom_call.1} parent=4 // loop_footer_branch
      %8 = sbr.rel target = $region7
    $region12: #{tpu_custom_call.1} parent=4 // loop_exit
      _
  $region5: #{tpu_custom_call.1} parent=0 // pred_fallthru
    _
  // Predicated region
  $region13: #{tpu_custom_call.1} parent=0 // pred_check
    _
  $region14: #{tpu_custom_call.1} parent=0 // pred_check_branch
    %21 = sbr.rel target = $region16
  $region15: #{tpu_custom_call.1} parent=0 // pred_region
    _
  $region16: #{tpu_custom_call.1} parent=0 // pred_fallthru
    _
  // Predicated region
  $region17: #{tpu_custom_call.1} parent=0 // pred_check
    _
  $region18: #{tpu_custom_call.1} parent=0 // pred_check_branch
    %24 = sbr.rel (0) target = $region20
  $region19: #{tpu_custom_call.1} parent=0 // pred_region
    %25 = vsyncadd [#allocation2], 256
  $region20: #{tpu_custom_call.1} parent=0 // pred_fallthru
    _
  %s26 = scalar_lea.vmem %s0, 16
  %s27 = scalar_lea.vmem %s1, 16
  %s28 = scalar_lea.sflag [#allocation2], 1
  // Predicated region
  $region21: #{tpu_custom_call.1} parent=0 // pred_check
    _
  $region22: #{tpu_custom_call.1} parent=0 // pred_check_branch
    %30 = sbr.rel (0) target = $region24
  $region23: #{tpu_custom_call.1} parent=0 // pred_region
    loop: start=0, step=1, limit=1
    $region25: #{tpu_custom_call.1} parent=23 // loop_pre_header
      _
    $region26: #{tpu_custom_call.1} parent=23 // loop_header
      %s32 = sphi 0, %s36
      %p33 = scmp.ge.s32.totalorder %s32, 1
      %s37 = sphi %s26, %s26
      %s38 = sphi %s27, %s27
    $region27: #{tpu_custom_call.1} parent=23 // loop_header_branch
      %35 = sbr.rel (%p33) target = $region31
    $region28: #{tpu_custom_call.1} parent=23 // loop_body
      %v39 = vld [vmem:[%s37] sm:$0xff]
      %40 = vst [vmem:[%s38] sm:$0xff] %v39
      %v41 = vld [vmem:[%s37 + $0x8] sm:$0xff]
      %42 = vst [vmem:[%s38 + $0x8] sm:$0xff] %v41
    $region29: #{tpu_custom_call.1} parent=23 // loop_footer
      %s36 = sadd.s32 1, %s32
    $region30: #{tpu_custom_call.1} parent=23 // loop_footer_branch
      %31 = sbr.rel target = $region26
    $region31: #{tpu_custom_call.1} parent=23 // loop_exit
      _
  $region24: #{tpu_custom_call.1} parent=0 // pred_fallthru
    _
  // Predicated region
  $region32: #{tpu_custom_call.1} parent=0 // pred_check
    _
  $region33: #{tpu_custom_call.1} parent=0 // pred_check_branch
    %44 = sbr.rel target = $region35
  $region34: #{tpu_custom_call.1} parent=0 // pred_region
    _
  $region35: #{tpu_custom_call.1} parent=0 // pred_fallthru
    _
  // Predicated region
  $region36: #{tpu_custom_call.1} parent=0 // pred_check
    _
  $region37: #{tpu_custom_call.1} parent=0 // pred_check_branch
    %47 = sbr.rel (0) target = $region39
  $region38: #{tpu_custom_call.1} parent=0 // pred_region
    %48 = vsyncadd %s28, 256
  $region39: #{tpu_custom_call.1} parent=0 // pred_fallthru
    _
  %s49 = scalar_lea.vmem %s0, 32
  %s50 = scalar_lea.vmem %s1, 32
  %s51 = scalar_lea.sflag [#allocation2], 2
  // Predicated region
  $region40: #{tpu_custom_call.1} parent=0 // pred_check
    _
  $region41: #{tpu_custom_call.1} parent=0 // pred_check_branch
    %53 = sbr.rel (0) target = $region43
  $region42: #{tpu_custom_call.1} parent=0 // pred_region
    loop: start=0, step=1, limit=1
    $region44: #{tpu_custom_call.1} parent=42 // loop_pre_header
      _
    $region45: #{tpu_custom_call.1} parent=42 // loop_header
      %s55 = sphi 0, %s59
      %p56 = scmp.ge.s32.totalorder %s55, 1
      %s60 = sphi %s49, %s49
      %s61 = sphi %s50, %s50
    $region46: #{tpu_custom_call.1} parent=42 // loop_header_branch
      %58 = sbr.rel (%p56) target = $region50
    $region47: #{tpu_custom_call.1} parent=42 // loop_body
      %v62 = vld [vmem:[%s60] sm:$0xff]
      %63 = vst [vmem:[%s61] sm:$0xff] %v62
      %v64 = vld [vmem:[%s60 + $0x8] sm:$0xff]
      %65 = vst [vmem:[%s61 + $0x8] sm:$0xff] %v64
    $region48: #{tpu_custom_call.1} parent=42 // loop_footer
      %s59 = sadd.s32 1, %s55
    $region49: #{tpu_custom_call.1} parent=42 // loop_footer_branch
      %54 = sbr.rel target = $region45
    $region50: #{tpu_custom_call.1} parent=42 // loop_exit
      _
  $region43: #{tpu_custom_call.1} parent=0 // pred_fallthru
    _
  // Predicated region
  $region51: #{tpu_custom_call.1} parent=0 // pred_check
    _
  $region52: #{tpu_custom_call.1} parent=0 // pred_check_branch
    %67 = sbr.rel target = $region54
  $region53: #{tpu_custom_call.1} parent=0 // pred_region
    _
  $region54: #{tpu_custom_call.1} parent=0 // pred_fallthru
    _
  // Predicated region
  $region55: #{tpu_custom_call.1} parent=0 // pred_check
    _
  $region56: #{tpu_custom_call.1} parent=0 // pred_check_branch
    %70 = sbr.rel (0) target = $region58
  $region57: #{tpu_custom_call.1} parent=0 // pred_region
    %71 = vsyncadd %s51, 256
  $region58: #{tpu_custom_call.1} parent=0 // pred_fallthru
    _
  %s72 = scalar_lea.vmem %s0, 48
  %s73 = scalar_lea.vmem %s1, 48
  %s74 = scalar_lea.sflag [#allocation2], 3
  // Predicated region
  $region59: #{tpu_custom_call.1} parent=0 // pred_check
    _
  $region60: #{tpu_custom_call.1} parent=0 // pred_check_branch
    %76 = sbr.rel (0) target = $region62
  $region61: #{tpu_custom_call.1} parent=0 // pred_region
    loop: start=0, step=1, limit=1
    $region63: #{tpu_custom_call.1} parent=61 // loop_pre_header
      _
    $region64: #{tpu_custom_call.1} parent=61 // loop_header
      %s78 = sphi 0, %s82
      %p79 = scmp.ge.s32.totalorder %s78, 1
      %s83 = sphi %s72, %s72
      %s84 = sphi %s73, %s73
    $region65: #{tpu_custom_call.1} parent=61 // loop_header_branch
      %81 = sbr.rel (%p79) target = $region69
    $region66: #{tpu_custom_call.1} parent=61 // loop_body
      %v85 = vld [vmem:[%s83] sm:$0xff]
      %86 = vst [vmem:[%s84] sm:$0xff] %v85
      %v87 = vld [vmem:[%s83 + $0x8] sm:$0xff]
      %88 = vst [vmem:[%s84 + $0x8] sm:$0xff] %v87
    $region67: #{tpu_custom_call.1} parent=61 // loop_footer
      %s82 = sadd.s32 1, %s78
    $region68: #{tpu_custom_call.1} parent=61 // loop_footer_branch
      %77 = sbr.rel target = $region64
    $region69: #{tpu_custom_call.1} parent=61 // loop_exit
      _
  $region62: #{tpu_custom_call.1} parent=0 // pred_fallthru
    _
  // Predicated region
  $region70: #{tpu_custom_call.1} parent=0 // pred_check
    _
  $region71: #{tpu_custom_call.1} parent=0 // pred_check_branch
    %90 = sbr.rel target = $region73
  $region72: #{tpu_custom_call.1} parent=0 // pred_region
    _
  $region73: #{tpu_custom_call.1} parent=0 // pred_fallthru
    _
  // Predicated region
  $region74: #{tpu_custom_call.1} parent=0 // pred_check
    _
  $region75: #{tpu_custom_call.1} parent=0 // pred_check_branch
    %93 = sbr.rel (0) target = $region77
  $region76: #{tpu_custom_call.1} parent=0 // pred_region
    %94 = vsyncadd %s74, 256
  $region77: #{tpu_custom_call.1} parent=0 // pred_fallthru
    _
  %s95 = smul.u32 16, 1
  %s96 = sshll.u32 %s95, 4
  %97 = dma.done [#allocation2], %s96
  %s98 = sshll.u32 %s95, 4
  %99 = dma.done %s28, %s98
  %s100 = sshll.u32 %s95, 4
  %101 = dma.done %s51, %s100
  %s102 = sshll.u32 %s95, 4
  %103 = dma.done %s74, %s102
  %104 = vsyncmov [#allocation2]
  %s105 = vpop.sfrf %104
  %p106 = scmp.eq.s32.totalorder %s105, 0
  %p107 = pneg %p106
  %109 = shalt.err (%p107)
  %s110 = scalar_lea.sflag [#allocation2], 1
  %111 = vsyncmov %s110
  %s112 = vpop.sfrf %111
  %p113 = scmp.eq.s32.totalorder %s112, 0
  %p114 = pneg %p113
  %116 = shalt.err (%p114)
  %s117 = scalar_lea.sflag [#allocation2], 2
  %118 = vsyncmov %s117
  %s119 = vpop.sfrf %118
  %p120 = scmp.eq.s32.totalorder %s119, 0
  %p121 = pneg %p120
  %123 = shalt.err (%p121)
  %s124 = scalar_lea.sflag [#allocation2], 3
  %125 = vsyncmov %s124
  %s126 = vpop.sfrf %125
  %p127 = scmp.eq.s32.totalorder %s126, 0
  %p128 = pneg %p127
  %130 = shalt.err (%p128)

</llo_original>
